<compile_context>
chip_gen: v5e
topology: v5e:2x2
jax: 0.10.0
libtpu: 0.0.40
codegen_flags: <defaults>
</compile_context>

<pallas_src>
import functools

import jax
import jax.numpy as jnp
from jax.experimental import pallas as pl
from jax.experimental.pallas import tpu as pltpu

EPS = 1e-5
COMPUTE_DTYPE = jnp.bfloat16    # MXU operand dtype (activations & weights)
Y1_DTYPE = jnp.bfloat16         # storage dtype of the conv1->conv2 intermediate


# ----------------------------- Pallas kernel ---------------------------------

def _conv3x3_kernel(*refs, taps, ho, wo, cin, cout, cres, ch_off, has_res,
                    out_cm):
    """Fused 3x3 conv + bias (+ residual) + ReLU + per-tile BN statistics.

    Implicit im2col: the (polyphase-stacked) padded input tile is resident in
    VMEM; each of the 9 taps is a contiguous window slice fed to a small MXU
    matmul and accumulated in f32.
    """
    if has_res:
        x_ref, w_ref, b_ref, res_ref, y_ref, st_ref = refs
    else:
        x_ref, w_ref, b_ref, y_ref, st_ref = refs
        res_ref = None

    m = ho * wo
    x = x_ref[...]                                        # (rows, Wp, Cin) bf16
    acc = jnp.zeros((m, cout), jnp.float32)
    for t, (r0, c0) in enumerate(taps):                   # unrolled 9-tap loop
        win = x[r0:r0 + ho, c0:c0 + wo, :].reshape(m, cin)
        acc = acc + jnp.dot(win, w_ref[t], preferred_element_type=jnp.float32)
    acc = acc + b_ref[...]                                # (1, cout) f32 bias

    if has_res:
        # f32 identity shortcut, placed at channels [ch_off, ch_off + cres).
        res = res_ref[...].reshape(m, cres)
        pad_r = cout - ch_off - cres
        parts = []
        if ch_off:
            parts.append(jnp.zeros((m, ch_off), jnp.float32))
        parts.append(res)
        if pad_r:
            parts.append(jnp.zeros((m, pad_r), jnp.float32))
        placed = jnp.concatenate(parts, axis=-1) if len(parts) > 1 else parts[0]
        acc = acc + placed

    y = jnp.maximum(acc, 0.0)                             # ReLU (pre-BN)

    # Per-tile centred statistics (sum, sum of centred squares); the exact
    # cross-tile combination happens in f32 in the wrapper.
    mu = jnp.mean(y, axis=0, keepdims=True)
    d = y - mu
    st_ref[0:1, :] = jnp.sum(y, axis=0, keepdims=True)
    st_ref[1:2, :] = jnp.sum(d * d, axis=0, keepdims=True)

    if out_cm:                                            # channel-major (C, Ho*Wo)
        y_ref[...] = jnp.transpose(y).astype(y_ref.dtype)
    else:                                                 # NHWC (Ho, Wo, C)
        y_ref[...] = y.reshape(ho, wo, cout).astype(y_ref.dtype)


# ----------------------------- Pallas wrapper ---------------------------------

def conv3x3(x_nhwc, w_hwio, bias, *, stride, residual=None, ch_off=0,
            out_dtype=jnp.float32, out_cm=False, compute_dtype=COMPUTE_DTYPE):
    """3x3 conv (pad=1), + bias, + optional residual, ReLU, per-tile BN stats.

    The padded input is polyphase-decomposed (stride 2) so that every tap is a
    contiguous slice of a single stacked array -> no strided loads in-kernel
    and no (M, 9*C) patch matrix in HBM.
    """
    n, h, wdim, cin = x_nhwc.shape
    cout = w_hwio.shape[-1]
    ho = (h - 1) // stride + 1
    wo = (wdim - 1) // stride + 1

    xp = jnp.pad(x_nhwc, ((0, 0), (1, 1), (1, 1), (0, 0)))
    if stride == 1:
        stacked = xp                                        # (N, H+2, W+2, C)
        taps = [(kh, kw) for kh in range(3) for kw in range(3)]
    elif stride == 2:
        hp = xp.shape[1] + (xp.shape[1] & 1)                # pad to even extents
        wp = xp.shape[2] + (xp.shape[2] & 1)
        xp = jnp.pad(xp, ((0, 0), (0, hp - xp.shape[1]),
                          (0, wp - xp.shape[2]), (0, 0)))
        rows = hp // 2
        # phase (bh, bw) holds xp[bh::2, bw::2]; tap (kh, kw) reads
        # phase[(kh%2, kw%2)] at (ho + kh//2, wo + kw//2).
        stacked = jnp.concatenate(
            [xp[:, bh::2, bw::2, :] for bh in range(2) for bw in range(2)],
            axis=1)                                         # (N, 4*rows, wp/2, C)
        taps = [(((kh % 2) * 2 + (kw % 2)) * rows + kh // 2, kw // 2)
                for kh in range(3) for kw in range(3)]
    else:
        raise NotImplementedError(f"stride={stride}")
    stacked = stacked.astype(compute_dtype)
    srows, scols = stacked.shape[1], stacked.shape[2]

    w_taps = w_hwio.reshape(9, cin, cout).astype(compute_dtype)
    bias = bias.reshape(1, cout).astype(jnp.float32)

    has_res = residual is not None
    cres = residual.shape[-1] if has_res else 0

    in_specs = [
        pl.BlockSpec((None, srows, scols, cin), lambda i: (i, 0, 0, 0)),
        pl.BlockSpec((9, cin, cout), lambda i: (0, 0, 0)),   # resident weights
        pl.BlockSpec((1, cout), lambda i: (0, 0)),           # resident bias
    ]
    args = [stacked, w_taps, bias]
    if has_res:
        in_specs.append(pl.BlockSpec((None, ho, wo, cres),
                                     lambda i: (i, 0, 0, 0)))
        args.append(residual.astype(jnp.float32))

    if out_cm:
        y_shape = (n, cout, ho * wo)
        y_spec = pl.BlockSpec((None, cout, ho * wo), lambda i: (i, 0, 0))
    else:
        y_shape = (n, ho, wo, cout)
        y_spec = pl.BlockSpec((None, ho, wo, cout), lambda i: (i, 0, 0, 0))

    kernel = functools.partial(
        _conv3x3_kernel, taps=taps, ho=ho, wo=wo, cin=cin, cout=cout,
        cres=cres, ch_off=ch_off, has_res=has_res, out_cm=out_cm)

    cdt = jnp.dtype(compute_dtype).itemsize
    tile_bytes = (srows * scols * cin * cdt
                  + ho * wo * cout * jnp.dtype(out_dtype).itemsize
                  + 2 * cout * 4
                  + (ho * wo * cres * 4 if has_res else 0))
    const_bytes = 9 * cin * cout * cdt + cout * 4
    # double-buffered tiles + resident constants, 4x headroom; clamp to a
    # v7x-safe 48 MiB (raise toward ~96 MiB on v5e/v6e for big row tiles).
    vmem_limit = int(min(max(4 * (2 * tile_bytes + 2 * const_bytes),
                             16 * 1024 * 1024), 48 * 1024 * 1024))
    cost = pl.CostEstimate(
        flops=2 * n * ho * wo * 9 * cin * cout,
        transcendentals=0,
        bytes_accessed=n * tile_bytes + const_bytes)

    y, stats = pl.pallas_call(
        kernel,
        grid_spec=pltpu.PrefetchScalarGridSpec(
            num_scalar_prefetch=0,
            grid=(n,),                              # per-image tiles; N >= 2
            in_specs=in_specs,                      # keeps both v7x TCs busy
            out_specs=[y_spec,
                       pl.BlockSpec((None, 2, cout), lambda i: (i, 0, 0))],
        ),
        out_shape=[jax.ShapeDtypeStruct(y_shape, out_dtype),
                   jax.ShapeDtypeStruct((n, 2, cout), jnp.float32)],
        compiler_params=pltpu.CompilerParams(
            dimension_semantics=("parallel",),
            vmem_limit_bytes=vmem_limit),
        cost_estimate=cost,
    )(*args)
    return y, stats, ho, wo


def bn_scale_shift(stats, m_per_tile, gamma, beta):
    """Exact combination of per-tile (sum, centred SSQ) -> BN (scale, shift)."""
    sums = stats[:, 0, :]                       # (tiles, C)
    cssq = stats[:, 1, :]
    count = stats.shape[0] * m_per_tile
    mean = jnp.sum(sums, axis=0) / count
    mean_t = sums / m_per_tile
    var = (jnp.sum(cssq, axis=0)
           + m_per_tile * jnp.sum((mean_t - mean) ** 2, axis=0)) / count
    inv = jax.lax.rsqrt(var + EPS)
    scale = gamma.reshape(-1) * inv
    shift = beta.reshape(-1) - mean * scale
    return scale, shift


# ------------------------------ forward pass ---------------------------------

def basic_block_forward(x_nchw, params, *, in_dims, out_dims, stride):
    x = jnp.transpose(x_nchw, (0, 2, 3, 1)).astype(jnp.float32)   # NCHW -> NHWC
    n = x.shape[0]

    # ---- conv1 -> bias -> ReLU (+ BN1 stats); y1 stored in bf16 ----
    y1, st1, ho1, wo1 = conv3x3(x, params['w1'], params['b1'], stride=stride,
                                out_dtype=Y1_DTYPE, out_cm=False)
    sc1, sh1 = bn_scale_shift(st1, ho1 * wo1, params['g1'], params['bt1'])

    # BN1 affine as plain jnp: XLA fuses it with conv2's pad / phase prep.
    t = (y1.astype(jnp.float32) * sc1.reshape(1, 1, 1, -1)
         + sh1.reshape(1, 1, 1, -1))

    # ---- shortcut (option 'A'): strided identity, added in f32 in-kernel ----
    # TODO(synk): option 'B' (1x1 conv + BN shortcut) not implemented; the
    # instantiated configuration uses option 'A' / identity only.
    if stride != 1 or in_dims != out_dims:
        res = x[:, ::2, ::2, :]                   # module hard-codes ::2
        ch_off = out_dims // 4
    else:
        res = x
        ch_off = 0

    # ---- conv2 -> bias -> +shortcut -> ReLU (+ BN2 stats), channel-major ----
    y2, st2, ho2, wo2 = conv3x3(t, params['w2'], params['b2'], stride=1,
                                residual=res, ch_off=ch_off,
                                out_dtype=jnp.float32, out_cm=True)
    sc2, sh2 = bn_scale_shift(st2, ho2 * wo2, params['g2'], params['bt2'])

    out = y2 * sc2.reshape(1, -1, 1) + sh2.reshape(1, -1, 1)      # (N, C, Ho*Wo)
    return out.reshape(n, out_dims, ho2, wo2)                     # already NCHW


# --------------------- pure-JAX reference for validation ---------------------

def reference_forward(x_nchw, params, *, in_dims, out_dims, stride):
    """Reference mirroring the kernel's mixed-precision policy (bf16 conv
    operands / bf16 y1 storage, f32 accumulation, epilogue and statistics)."""
    q = lambda a: a.astype(COMPUTE_DTYPE).astype(jnp.float32)
    x = jnp.transpose(x_nchw, (0, 2, 3, 1)).astype(jnp.float32)

    def conv(xx, w, b, s):
        y = jax.lax.conv_general_dilated(
            q(xx), q(w), window_strides=(s, s), padding=((1, 1), (1, 1)),
            dimension_numbers=('NHWC', 'HWIO', 'NHWC'),
            precision=jax.lax.Precision.HIGHEST)
        return y + b.reshape(1, 1, 1, -1)

    def bn_affine(y, g, bta):
        m = jnp.mean(y, axis=(0, 1, 2))
        v = jnp.mean((y - m) ** 2, axis=(0, 1, 2))
        scale = g.reshape(-1) / jnp.sqrt(v + EPS)
        shift = bta.reshape(-1) - m * scale
        return scale.reshape(1, 1, 1, -1), shift.reshape(1, 1, 1, -1)

    y1 = jax.nn.relu(conv(x, params['w1'], params['b1'], stride))
    sc1, sh1 = bn_affine(y1, params['g1'], params['bt1'])
    t = y1.astype(Y1_DTYPE).astype(jnp.float32) * sc1 + sh1

    y2 = conv(t, params['w2'], params['b2'], 1)
    if stride != 1 or in_dims != out_dims:
        p = out_dims // 4
        sc = jnp.pad(x[:, ::2, ::2, :], ((0, 0), (0, 0), (0, 0), (p, p)))
    else:
        sc = x
    y2 = jax.nn.relu(y2 + sc)
    sc2, sh2 = bn_affine(y2, params['g2'], params['bt2'])
    out = y2 * sc2 + sh2
    return jnp.transpose(out, (0, 3, 1, 2))


if __name__ == "__main__":
    in_dims, out_dims, stride = 4, 8, 2          # downsampling block, option 'A'
    n, h, w = 2, 16, 16

    key = jax.random.PRNGKey(0)
    keys = jax.random.split(key, 9)
    x = jax.random.normal(keys[0], (n, in_dims, h, w), jnp.float32)
    params = dict(
        w1=0.2 * jax.random.normal(keys[1], (3, 3, in_dims, out_dims), jnp.float32),
        b1=0.1 * jax.random.normal(keys[2], (1, out_dims), jnp.float32),
        g1=1.0 + 0.1 * jax.random.normal(keys[3], (1, out_dims), jnp.float32),
        bt1=0.1 * jax.random.normal(keys[4], (1, out_dims), jnp.float32),
        w2=0.2 * jax.random.normal(keys[5], (3, 3, out_dims, out_dims), jnp.float32),
        b2=0.1 * jax.random.normal(keys[6], (1, out_dims), jnp.float32),
        g2=1.0 + 0.1 * jax.random.normal(keys[7], (1, out_dims), jnp.float32),
        bt2=0.1 * jax.random.normal(keys[8], (1, out_dims), jnp.float32),
    )

    out = basic_block_forward(x, params, in_dims=in_dims, out_dims=out_dims,
                              stride=stride)
    out = jax.block_until_ready(out)
    assert out.shape == (n, out_dims, h // stride, w // stride), out.shape

    ref = reference_forward(x, params, in_dims=in_dims, out_dims=out_dims,
                            stride=stride)
    max_err = float(jnp.max(jnp.abs(out - ref)))
    assert jnp.allclose(out, ref, rtol=2e-3, atol=2e-3), f"max abs err {max_err}"

    print("KERNEL_OK")
</pallas_src>

<mosaic_0001>
module attributes {stable_mosaic.version = 11 : i64} {
  func.func @_conv3x3_kernel(%arg0: i32, %arg1: memref<1x36x9x4xbf16, #tpu.memory_space<vmem>>, %arg2: memref<9x4x8xbf16, #tpu.memory_space<vmem>>, %arg3: memref<1x8xf32, #tpu.memory_space<vmem>>, %arg4: memref<1x8x8x8xbf16, #tpu.memory_space<vmem>>, %arg5: memref<1x2x8xf32, #tpu.memory_space<vmem>>) attributes {dimension_semantics = [#tpu.dimension_semantics<parallel>], iteration_bounds = array<i64: 2>, scalar_prefetch = 0 : i64, scratch_operands = 0 : i64, tpu.core_type = #tpu.core_type<tc>, window_params = [{transform_indices = @transform_0, window_bounds = array<i64: 1, 36, 9, 4>}, {pipeline_mode = #tpu.pipeline_mode<synchronous>, transform_indices = @transform_1, window_bounds = array<i64: 9, 4, 8>}, {pipeline_mode = #tpu.pipeline_mode<synchronous>, transform_indices = @transform_2, window_bounds = array<i64: 1, 8>}, {transform_indices = @transform_3, window_bounds = array<i64: 1, 8, 8, 8>}, {transform_indices = @transform_4, window_bounds = array<i64: 1, 2, 8>}]} {
    %c0 = arith.constant 0 : index
    %c0_0 = arith.constant 0 : index
    %c0_1 = arith.constant 0 : index
    %c0_2 = arith.constant 0 : index
    %0 = vector.load %arg1[%c0, %c0_0, %c0_1, %c0_2] : memref<1x36x9x4xbf16, #tpu.memory_space<vmem>>, vector<1x36x9x4xbf16>
    %1 = vector.shape_cast %0 : vector<1x36x9x4xbf16> to vector<36x9x4xbf16>
    %cst = arith.constant 0.000000e+00 : f32
    %2 = vector.broadcast %cst : f32 to vector<64x8xf32>
    %3 = vector.extract_strided_slice %1 {offsets = [0, 0, 0], sizes = [8, 8, 4], strides = [1, 1, 1]} : vector<36x9x4xbf16> to vector<8x8x4xbf16>
    %4 = vector.shape_cast %3 : vector<8x8x4xbf16> to vector<64x4xbf16>
    %c0_3 = arith.constant 0 : index
    %c0_4 = arith.constant 0 : index
    %c0_5 = arith.constant 0 : index
    %5 = vector.load %arg2[%c0_3, %c0_4, %c0_5] : memref<9x4x8xbf16, #tpu.memory_space<vmem>>, vector<1x4x8xbf16>
    %6 = vector.shape_cast %5 : vector<1x4x8xbf16> to vector<4x8xbf16>
    %cst_6 = arith.constant dense<0.000000e+00> : vector<64x8xf32>
    %7 = tpu.matmul %4, %6, %cst_6 {dimension_numbers = #tpu.dot_dimension_numbers<[1], [0], [0], [1], [0, 0, 1, 1], [], []>} : vector<64x4xbf16>, vector<4x8xbf16>, vector<64x8xf32> -> vector<64x8xf32>
    %8 = arith.addf %2, %7 : vector<64x8xf32>
    %9 = vector.extract_strided_slice %1 {offsets = [9, 0, 0], sizes = [8, 8, 4], strides = [1, 1, 1]} : vector<36x9x4xbf16> to vector<8x8x4xbf16>
    %10 = vector.shape_cast %9 : vector<8x8x4xbf16> to vector<64x4xbf16>
    %c1 = arith.constant 1 : index
    %c0_7 = arith.constant 0 : index
    %c0_8 = arith.constant 0 : index
    %11 = vector.load %arg2[%c1, %c0_7, %c0_8] : memref<9x4x8xbf16, #tpu.memory_space<vmem>>, vector<1x4x8xbf16>
    %12 = vector.shape_cast %11 : vector<1x4x8xbf16> to vector<4x8xbf16>
    %cst_9 = arith.constant dense<0.000000e+00> : vector<64x8xf32>
    %13 = tpu.matmul %10, %12, %cst_9 {dimension_numbers = #tpu.dot_dimension_numbers<[1], [0], [0], [1], [0, 0, 1, 1], [], []>} : vector<64x4xbf16>, vector<4x8xbf16>, vector<64x8xf32> -> vector<64x8xf32>
    %14 = arith.addf %8, %13 : vector<64x8xf32>
    %15 = vector.extract_strided_slice %1 {offsets = [0, 1, 0], sizes = [8, 8, 4], strides = [1, 1, 1]} : vector<36x9x4xbf16> to vector<8x8x4xbf16>
    %16 = vector.shape_cast %15 : vector<8x8x4xbf16> to vector<64x4xbf16>
    %c2 = arith.constant 2 : index
    %c0_10 = arith.constant 0 : index
    %c0_11 = arith.constant 0 : index
    %17 = vector.load %arg2[%c2, %c0_10, %c0_11] : memref<9x4x8xbf16, #tpu.memory_space<vmem>>, vector<1x4x8xbf16>
    %18 = vector.shape_cast %17 : vector<1x4x8xbf16> to vector<4x8xbf16>
    %cst_12 = arith.constant dense<0.000000e+00> : vector<64x8xf32>
    %19 = tpu.matmul %16, %18, %cst_12 {dimension_numbers = #tpu.dot_dimension_numbers<[1], [0], [0], [1], [0, 0, 1, 1], [], []>} : vector<64x4xbf16>, vector<4x8xbf16>, vector<64x8xf32> -> vector<64x8xf32>
    %20 = arith.addf %14, %19 : vector<64x8xf32>
    %21 = vector.extract_strided_slice %1 {offsets = [18, 0, 0], sizes = [8, 8, 4], strides = [1, 1, 1]} : vector<36x9x4xbf16> to vector<8x8x4xbf16>
    %22 = vector.shape_cast %21 : vector<8x8x4xbf16> to vector<64x4xbf16>
    %c3 = arith.constant 3 : index
    %c0_13 = arith.constant 0 : index
    %c0_14 = arith.constant 0 : index
    %23 = vector.load %arg2[%c3, %c0_13, %c0_14] : memref<9x4x8xbf16, #tpu.memory_space<vmem>>, vector<1x4x8xbf16>
    %24 = vector.shape_cast %23 : vector<1x4x8xbf16> to vector<4x8xbf16>
    %cst_15 = arith.constant dense<0.000000e+00> : vector<64x8xf32>
    %25 = tpu.matmul %22, %24, %cst_15 {dimension_numbers = #tpu.dot_dimension_numbers<[1], [0], [0], [1], [0, 0, 1, 1], [], []>} : vector<64x4xbf16>, vector<4x8xbf16>, vector<64x8xf32> -> vector<64x8xf32>
    %26 = arith.addf %20, %25 : vector<64x8xf32>
    %27 = vector.extract_strided_slice %1 {offsets = [27, 0, 0], sizes = [8, 8, 4], strides = [1, 1, 1]} : vector<36x9x4xbf16> to vector<8x8x4xbf16>
    %28 = vector.shape_cast %27 : vector<8x8x4xbf16> to vector<64x4xbf16>
    %c4 = arith.constant 4 : index
    %c0_16 = arith.constant 0 : index
    %c0_17 = arith.constant 0 : index
    %29 = vector.load %arg2[%c4, %c0_16, %c0_17] : memref<9x4x8xbf16, #tpu.memory_space<vmem>>, vector<1x4x8xbf16>
    %30 = vector.shape_cast %29 : vector<1x4x8xbf16> to vector<4x8xbf16>
    %cst_18 = arith.constant dense<0.000000e+00> : vector<64x8xf32>
    %31 = tpu.matmul %28, %30, %cst_18 {dimension_numbers = #tpu.dot_dimension_numbers<[1], [0], [0], [1], [0, 0, 1, 1], [], []>} : vector<64x4xbf16>, vector<4x8xbf16>, vector<64x8xf32> -> vector<64x8xf32>
    %32 = arith.addf %26, %31 : vector<64x8xf32>
    %33 = vector.extract_strided_slice %1 {offsets = [18, 1, 0], sizes = [8, 8, 4], strides = [1, 1, 1]} : vector<36x9x4xbf16> to vector<8x8x4xbf16>
    %34 = vector.shape_cast %33 : vector<8x8x4xbf16> to vector<64x4xbf16>
    %c5 = arith.constant 5 : index
    %c0_19 = arith.constant 0 : index
    %c0_20 = arith.constant 0 : index
    %35 = vector.load %arg2[%c5, %c0_19, %c0_20] : memref<9x4x8xbf16, #tpu.memory_space<vmem>>, vector<1x4x8xbf16>
    %36 = vector.shape_cast %35 : vector<1x4x8xbf16> to vector<4x8xbf16>
    %cst_21 = arith.constant dense<0.000000e+00> : vector<64x8xf32>
    %37 = tpu.matmul %34, %36, %cst_21 {dimension_numbers = #tpu.dot_dimension_numbers<[1], [0], [0], [1], [0, 0, 1, 1], [], []>} : vector<64x4xbf16>, vector<4x8xbf16>, vector<64x8xf32> -> vector<64x8xf32>
    %38 = arith.addf %32, %37 : vector<64x8xf32>
    %39 = vector.extract_strided_slice %1 {offsets = [1, 0, 0], sizes = [8, 8, 4], strides = [1, 1, 1]} : vector<36x9x4xbf16> to vector<8x8x4xbf16>
    %40 = vector.shape_cast %39 : vector<8x8x4xbf16> to vector<64x4xbf16>
    %c6 = arith.constant 6 : index
    %c0_22 = arith.constant 0 : index
    %c0_23 = arith.constant 0 : index
    %41 = vector.load %arg2[%c6, %c0_22, %c0_23] : memref<9x4x8xbf16, #tpu.memory_space<vmem>>, vector<1x4x8xbf16>
    %42 = vector.shape_cast %41 : vector<1x4x8xbf16> to vector<4x8xbf16>
    %cst_24 = arith.constant dense<0.000000e+00> : vector<64x8xf32>
    %43 = tpu.matmul %40, %42, %cst_24 {dimension_numbers = #tpu.dot_dimension_numbers<[1], [0], [0], [1], [0, 0, 1, 1], [], []>} : vector<64x4xbf16>, vector<4x8xbf16>, vector<64x8xf32> -> vector<64x8xf32>
    %44 = arith.addf %38, %43 : vector<64x8xf32>
    %45 = vector.extract_strided_slice %1 {offsets = [10, 0, 0], sizes = [8, 8, 4], strides = [1, 1, 1]} : vector<36x9x4xbf16> to vector<8x8x4xbf16>
    %46 = vector.shape_cast %45 : vector<8x8x4xbf16> to vector<64x4xbf16>
    %c7 = arith.constant 7 : index
    %c0_25 = arith.constant 0 : index
    %c0_26 = arith.constant 0 : index
    %47 = vector.load %arg2[%c7, %c0_25, %c0_26] : memref<9x4x8xbf16, #tpu.memory_space<vmem>>, vector<1x4x8xbf16>
    %48 = vector.shape_cast %47 : vector<1x4x8xbf16> to vector<4x8xbf16>
    %cst_27 = arith.constant dense<0.000000e+00> : vector<64x8xf32>
    %49 = tpu.matmul %46, %48, %cst_27 {dimension_numbers = #tpu.dot_dimension_numbers<[1], [0], [0], [1], [0, 0, 1, 1], [], []>} : vector<64x4xbf16>, vector<4x8xbf16>, vector<64x8xf32> -> vector<64x8xf32>
    %50 = arith.addf %44, %49 : vector<64x8xf32>
    %51 = vector.extract_strided_slice %1 {offsets = [1, 1, 0], sizes = [8, 8, 4], strides = [1, 1, 1]} : vector<36x9x4xbf16> to vector<8x8x4xbf16>
    %52 = vector.shape_cast %51 : vector<8x8x4xbf16> to vector<64x4xbf16>
    %c8 = arith.constant 8 : index
    %c0_28 = arith.constant 0 : index
    %c0_29 = arith.constant 0 : index
    %53 = vector.load %arg2[%c8, %c0_28, %c0_29] : memref<9x4x8xbf16, #tpu.memory_space<vmem>>, vector<1x4x8xbf16>
    %54 = vector.shape_cast %53 : vector<1x4x8xbf16> to vector<4x8xbf16>
    %cst_30 = arith.constant dense<0.000000e+00> : vector<64x8xf32>
    %55 = tpu.matmul %52, %54, %cst_30 {dimension_numbers = #tpu.dot_dimension_numbers<[1], [0], [0], [1], [0, 0, 1, 1], [], []>} : vector<64x4xbf16>, vector<4x8xbf16>, vector<64x8xf32> -> vector<64x8xf32>
    %56 = arith.addf %50, %55 : vector<64x8xf32>
    %c0_31 = arith.constant 0 : index
    %c0_32 = arith.constant 0 : index
    %57 = vector.load %arg3[%c0_31, %c0_32] : memref<1x8xf32, #tpu.memory_space<vmem>>, vector<1x8xf32>
    %58 = vector.broadcast %57 : vector<1x8xf32> to vector<64x8xf32>
    %59 = arith.addf %56, %58 : vector<64x8xf32>
    %cst_33 = arith.constant 0.000000e+00 : f32
    %60 = vector.broadcast %cst_33 : f32 to vector<64x8xf32>
    %61 = arith.maximumf %59, %60 : vector<64x8xf32>
    %cst_34 = arith.constant dense<0.000000e+00> : vector<8xf32>
    %62 = vector.multi_reduction <add>, %61, %cst_34 [0] : vector<64x8xf32> to vector<8xf32>
    %63 = vector.shape_cast %62 : vector<8xf32> to vector<1x8xf32>
    %cst_35 = arith.constant 6.400000e+01 : f32
    %64 = vector.broadcast %cst_35 : f32 to vector<1x8xf32>
    %65 = arith.divf %63, %64 : vector<1x8xf32>
    %66 = vector.broadcast %65 : vector<1x8xf32> to vector<64x8xf32>
    %67 = arith.subf %61, %66 : vector<64x8xf32>
    %cst_36 = arith.constant dense<0.000000e+00> : vector<8xf32>
    %68 = vector.multi_reduction <add>, %61, %cst_36 [0] : vector<64x8xf32> to vector<8xf32>
    %69 = vector.shape_cast %68 : vector<8xf32> to vector<1x8xf32>
    %c0_37 = arith.constant 0 : index
    %c0_38 = arith.constant 0 : index
    %c0_39 = arith.constant 0 : index
    %70 = vector.load %arg5[%c0_37, %c0_38, %c0_39] : memref<1x2x8xf32, #tpu.memory_space<vmem>>, vector<1x1x8xf32>
    %71 = vector.shape_cast %70 : vector<1x1x8xf32> to vector<1x8xf32>
    %72 = vector.shape_cast %69 : vector<1x8xf32> to vector<1x1x8xf32>
    tpu.vector_store %arg5[%c0_37, %c0_38, %c0_39], %72 {strides = array<i32>} : memref<1x2x8xf32, #tpu.memory_space<vmem>>, vector<1x1x8xf32>,
    %73 = arith.mulf %67, %67 : vector<64x8xf32>
    %cst_40 = arith.constant dense<0.000000e+00> : vector<8xf32>
    %74 = vector.multi_reduction <add>, %73, %cst_40 [0] : vector<64x8xf32> to vector<8xf32>
    %75 = vector.shape_cast %74 : vector<8xf32> to vector<1x8xf32>
    %c0_41 = arith.constant 0 : index
    %c1_42 = arith.constant 1 : index
    %c0_43 = arith.constant 0 : index
    %76 = vector.load %arg5[%c0_41, %c1_42, %c0_43] : memref<1x2x8xf32, #tpu.memory_space<vmem>>, vector<1x1x8xf32>
    %77 = vector.shape_cast %76 : vector<1x1x8xf32> to vector<1x8xf32>
    %78 = vector.shape_cast %75 : vector<1x8xf32> to vector<1x1x8xf32>
    tpu.vector_store %arg5[%c0_41, %c1_42, %c0_43], %78 {strides = array<i32>} : memref<1x2x8xf32, #tpu.memory_space<vmem>>, vector<1x1x8xf32>,
    %79 = vector.shape_cast %61 : vector<64x8xf32> to vector<8x8x8xf32>
    %80 = arith.truncf %79 : vector<8x8x8xf32> to vector<8x8x8xbf16>
    %c0_44 = arith.constant 0 : index
    %c0_45 = arith.constant 0 : index
    %c0_46 = arith.constant 0 : index
    %c0_47 = arith.constant 0 : index
    %81 = vector.load %arg4[%c0_44, %c0_45, %c0_46, %c0_47] : memref<1x8x8x8xbf16, #tpu.memory_space<vmem>>, vector<1x8x8x8xbf16>
    %82 = vector.shape_cast %81 : vector<1x8x8x8xbf16> to vector<8x8x8xbf16>
    %83 = vector.shape_cast %80 : vector<8x8x8xbf16> to vector<1x8x8x8xbf16>
    tpu.vector_store %arg4[%c0_44, %c0_45, %c0_46, %c0_47], %83 {strides = array<i32>} : memref<1x8x8x8xbf16, #tpu.memory_space<vmem>>, vector<1x8x8x8xbf16>,
    return
  }
  func.func @transform_0(%arg0: i32) -> (i32, i32, i32, i32) {
    %c0_i32 = arith.constant 0 : i32
    %c0_i32_0 = arith.constant 0 : i32
    %c0_i32_1 = arith.constant 0 : i32
    %c0_i32_2 = arith.constant 0 : i32
    return %arg0, %c0_i32, %c0_i32_0, %c0_i32_1 : i32, i32, i32, i32
  }
  func.func @transform_1(%arg0: i32) -> (i32, i32, i32) {
    %c0_i32 = arith.constant 0 : i32
    %c0_i32_0 = arith.constant 0 : i32
    %c0_i32_1 = arith.constant 0 : i32
    %c0_i32_2 = arith.constant 0 : i32
    return %c0_i32, %c0_i32_0, %c0_i32_1 : i32, i32, i32
  }
  func.func @transform_2(%arg0: i32) -> (i32, i32) {
    %c0_i32 = arith.constant 0 : i32
    %c0_i32_0 = arith.constant 0 : i32
    %c0_i32_1 = arith.constant 0 : i32
    return %c0_i32, %c0_i32_0 : i32, i32
  }
  func.func @transform_3(%arg0: i32) -> (i32, i32, i32, i32) {
    %c0_i32 = arith.constant 0 : i32
    %c0_i32_0 = arith.constant 0 : i32
    %c0_i32_1 = arith.constant 0 : i32
    %c0_i32_2 = arith.constant 0 : i32
    return %arg0, %c0_i32, %c0_i32_0, %c0_i32_1 : i32, i32, i32, i32
  }
  func.func @transform_4(%arg0: i32) -> (i32, i32, i32) {
    %c0_i32 = arith.constant 0 : i32
    %c0_i32_0 = arith.constant 0 : i32
    %c0_i32_1 = arith.constant 0 : i32
    return %arg0, %c0_i32, %c0_i32_0 : i32, i32, i32
  }
}

</mosaic_0001>

<llo_original>
// kernel: tpu_custom_call.1
$region0: #{tpu_custom_call.1}
  #allocation0 [shape = 'u32[]', space=smem, size = 0x4, offset = 0x4, fixed_abs, tag = 'smem constant byte address 0x4 - core index']
  #allocation1 [shape = 'u32[72,128]{1,0:T(1,128)}', space=vmem, size = 0x9000, scoped, tag = 'internal scratch']
  %s0 = inlined_call_operand.vmem [shape: bf16[2,36,9,4], index: 0, kind: input, shape index: {}]
  %s1 = inlined_call_operand.vmem [shape: bf16[9,4,8], index: 1, kind: input, shape index: {}]
  %s2 = inlined_call_operand.vmem [shape: f32[1,8], index: 2, kind: input, shape index: {}]
  %s3 = inlined_call_operand.hbm [shape: bf16[2,8,8,8], index: 3, kind: output, shape index: {0}]
  %s4 = inlined_call_operand.hbm [shape: f32[2,2,8], index: 4, kind: output, shape index: {1}]
  %5 = xla_tuple %s3, %s4
  %s6 = sld [smem:[#allocation0]]
  $region53: #{tpu_custom_call.1} parent=0
    _
  %s8 = ssub.s32 1, %s6
  %s9 = scalar_select 0, %s8, %s6
  $region1: #{tpu_custom_call.1} parent=0
    #allocation2 [shape = 'u8[32768]{0}', space=vmem, size = 0x8000, scoped, tag = 'output window, operand 0']
    #allocation3 [shape = 's32[2]{0}', space=sflag, size = 0x8, scoped, tag = 'scoped memory for tpu_custom_call.1']
    #allocation4 [shape = 'u8[2048]{0}', space=vmem, size = 0x800, scoped, tag = 'output window, operand 1']
    #allocation5 [shape = 's32[2]{0}', space=sflag, size = 0x8, scoped, tag = 'scoped memory for tpu_custom_call.1']
    %10 = vsyncpa [#allocation3], 0
    %s11 = scalar_lea.sflag [#allocation3], 1
    %12 = vsyncpa %s11, 0
    %13 = vsyncpa [#allocation5], 0
    %s14 = scalar_lea.sflag [#allocation5], 1
    %15 = vsyncpa %s14, 0
    loop: start=0, step=1, limit=4
    $region2: #{tpu_custom_call.1} parent=1 // loop_pre_header
      _
    $region3: #{tpu_custom_call.1} parent=1 // loop_header
      %s17 = sphi 0, %s21
      %p18 = scmp.ge.s32.totalorder %s17, 4
      %s27 = sphi 0, %s29
      %s30 = sphi 0, %s27
      %s31 = sphi 0, %s30
      %s47 = sphi 0, %s31
      %s51 = sphi 0, %s51
      %s53 = sphi 0, %s51
      %s54 = sphi 0, %s53
      %s68 = sphi 0, %s54
      %s72 = sphi 0, %s72
      %s74 = sphi 0, %s72
      %s75 = sphi 0, %s74
      %s89 = sphi 0, %s75
      %s95 = sphi 0, %s97
      %s98 = sphi 0, %s95
      %s99 = sphi 0, %s98
      %s115 = sphi 0, %s99
      %s121 = sphi 0, %s123
      %s124 = sphi 0, %s121
      %s125 = sphi 0, %s124
      %s141 = sphi 0, %s125
    $region4: #{tpu_custom_call.1} parent=1 // loop_header_branch
      %20 = sbr.rel (%p18) target = $region8
    $region5: #{tpu_custom_call.1} parent=1 // loop_body
      %s22 = ssub.s32 %s17, 1
      %s23 = ssub.s32 %s17, 2
      %s24 = sadd.s32 %s17, 1
      %s25 = ssub.s32 %s17, %s24
      %p26 = scmp.eq.s32.totalorder %s25, 0
      %s28 = sadd.s32 %s27, 1
      %s29 = scalar_select %p26, %s27, %s28
      %p32 = pneg %p26
      %p33 = scmp.eq.s32.totalorder %s17, 1
      %p34 = por %p32, %p33
      %p35 = scmp.ne.s32.totalorder %s27, %s30
      %p36 = scmp.eq.s32.totalorder %s17, 0
      %p37 = por %p35, %p36
      %p38 = scmp.ne.s32.totalorder %s27, %s30
      %p39 = scmp.eq.s32.totalorder %s22, 1
      %p40 = por %p38, %p39
      %p41 = scmp.ne.s32.totalorder %s30, %s31
      %p42 = scmp.eq.s32.totalorder %s22, 0
      %p43 = por %p41, %p42
      %p44 = scmp.ne.s32.totalorder %s30, %s31
      %p45 = scmp.eq.s32.totalorder %s23, 1
      %p46 = por %p44, %p45
      %p48 = scmp.ne.s32.totalorder %s31, %s47
      %p49 = scmp.eq.s32.totalorder %s23, 0
      %p50 = por %p48, %p49
      %s52 = sadd.s32 %s51, 1
      %p55 = scmp.eq.s32.totalorder %s17, 1
      %p56 = scmp.ne.s32.totalorder %s51, %s53
      %p57 = scmp.eq.s32.totalorder %s17, 0
      %p58 = por %p56, %p57
      %p59 = scmp.ne.s32.totalorder %s51, %s53
      %p60 = scmp.eq.s32.totalorder %s22, 1
      %p61 = por %p59, %p60
      %p62 = scmp.ne.s32.totalorder %s53, %s54
      %p63 = scmp.eq.s32.totalorder %s22, 0
      %p64 = por %p62, %p63
      %p65 = scmp.ne.s32.totalorder %s53, %s54
      %p66 = scmp.eq.s32.totalorder %s23, 1
      %p67 = por %p65, %p66
      %p69 = scmp.ne.s32.totalorder %s54, %s68
      %p70 = scmp.eq.s32.totalorder %s23, 0
      %p71 = por %p69, %p70
      %s73 = sadd.s32 %s72, 1
      %p76 = scmp.eq.s32.totalorder %s17, 1
      %p77 = scmp.ne.s32.totalorder %s72, %s74
      %p78 = scmp.eq.s32.totalorder %s17, 0
      %p79 = por %p77, %p78
      %p80 = scmp.ne.s32.totalorder %s72, %s74
      %p81 = scmp.eq.s32.totalorder %s22, 1
      %p82 = por %p80, %p81
      %p83 = scmp.ne.s32.totalorder %s74, %s75
      %p84 = scmp.eq.s32.totalorder %s22, 0
      %p85 = por %p83, %p84
      %p86 = scmp.ne.s32.totalorder %s74, %s75
      %p87 = scmp.eq.s32.totalorder %s23, 1
      %p88 = por %p86, %p87
      %p90 = scmp.ne.s32.totalorder %s75, %s89
      %p91 = scmp.eq.s32.totalorder %s23, 0
      %p92 = por %p90, %p91
      %s93 = ssub.s32 %s17, %s24
      %p94 = scmp.eq.s32.totalorder %s93, 0
      %s96 = sadd.s32 %s95, 1
      %s97 = scalar_select %p94, %s95, %s96
      %p100 = pneg %p94
      %p101 = scmp.eq.s32.totalorder %s17, 1
      %p102 = por %p100, %p101
      %p103 = scmp.ne.s32.totalorder %s95, %s98
      %p104 = scmp.eq.s32.totalorder %s17, 0
      %p105 = por %p103, %p104
      %p106 = scmp.ne.s32.totalorder %s95, %s98
      %p107 = scmp.eq.s32.totalorder %s22, 1
      %p108 = por %p106, %p107
      %p109 = scmp.ne.s32.totalorder %s98, %s99
      %p110 = scmp.eq.s32.totalorder %s22, 0
      %p111 = por %p109, %p110
      %p112 = scmp.ne.s32.totalorder %s98, %s99
      %p113 = scmp.eq.s32.totalorder %s23, 1
      %p114 = por %p112, %p113
      %p116 = scmp.ne.s32.totalorder %s99, %s115
      %p117 = scmp.eq.s32.totalorder %s23, 0
      %p118 = por %p116, %p117
      %s119 = ssub.s32 %s17, %s24
      %p120 = scmp.eq.s32.totalorder %s119, 0
      %s122 = sadd.s32 %s121, 1
      %s123 = scalar_select %p120, %s121, %s122
      %p126 = pneg %p120
      %p127 = scmp.eq.s32.totalorder %s17, 1
      %p128 = por %p126, %p127
      %p129 = scmp.ne.s32.totalorder %s121, %s124
      %p130 = scmp.eq.s32.totalorder %s17, 0
      %p131 = por %p129, %p130
      %p132 = scmp.ne.s32.totalorder %s121, %s124
      %p133 = scmp.eq.s32.totalorder %s22, 1
      %p134 = por %p132, %p133
      %p135 = scmp.ne.s32.totalorder %s124, %s125
      %p136 = scmp.eq.s32.totalorder %s22, 0
      %p137 = por %p135, %p136
      %p138 = scmp.ne.s32.totalorder %s124, %s125
      %p139 = scmp.eq.s32.totalorder %s23, 1
      %p140 = por %p138, %p139
      %p142 = scmp.ne.s32.totalorder %s125, %s141
      %p143 = scmp.eq.s32.totalorder %s23, 0
      %p144 = por %p142, %p143
      %p145 = scmp.le.s32.totalorder 1, %s17
      %p146 = scmp.lt.s32.totalorder %s17, 3
      %p147 = pnand %p145, %p146
      %p148 = pneg %p147
      // Predicated region
      $region9: #{tpu_custom_call.1} parent=5 // pred_check
        _
      $region10: #{tpu_custom_call.1} parent=5 // pred_check_branch
        %150 = sbr.rel (%p147) target = $region12
      $region11: #{tpu_custom_call.1} parent=5 // pred_region
        %s151 = ssub.s32 %s17, 1
        // Predicated region
        $region13: #{tpu_custom_call.1} parent=11 // pred_check
          %p152 = pneg %p64
        $region14: #{tpu_custom_call.1} parent=11 // pred_check_branch
          %154 = sbr.rel (%p152) target = $region16
        $region15: #{tpu_custom_call.1} parent=11 // pred_region
          _
        $region16: #{tpu_custom_call.1} parent=11 // pred_fallthru
          _
        // Predicated region
        $region17: #{tpu_custom_call.1} parent=11 // pred_check
          %p155 = pneg %p85
        $region18: #{tpu_custom_call.1} parent=11 // pred_check_branch
          %157 = sbr.rel (%p155) target = $region20
        $region19: #{tpu_custom_call.1} parent=11 // pred_region
          _
        $region20: #{tpu_custom_call.1} parent=11 // pred_fallthru
          _
      $region12: #{tpu_custom_call.1} parent=5 // pred_fallthru
        _
      %p158 = scmp.lt.s32.totalorder %s17, 2
      // Predicated region
      $region21: #{tpu_custom_call.1} parent=5 // pred_check
        %p159 = pneg %p158
      $region22: #{tpu_custom_call.1} parent=5 // pred_check_branch
        %161 = sbr.rel (%p159) target = $region24
      $region23: #{tpu_custom_call.1} parent=5 // pred_region
        // Predicated region
        $region25: #{tpu_custom_call.1} parent=23 // pred_check
          %p162 = pneg %p37
        $region26: #{tpu_custom_call.1} parent=23 // pred_check_branch
          %164 = sbr.rel (%p162) target = $region28
        $region27: #{tpu_custom_call.1} parent=23 // pred_region
          %p165 = scmp.lt.s32.totalorder %s17, 1
          %s166 = scalar_select %p165, %s17, 1
          %s167 = smul.addr %s166, 72
          %s168 = smul.addr %s167, 4
          %s169 = scalar_lea.vmem %s0, %s168
        $region28: #{tpu_custom_call.1} parent=23 // pred_fallthru
          _
      $region24: #{tpu_custom_call.1} parent=5 // pred_fallthru
        _
      %p170 = scmp.le.s32.totalorder 1, %s17
      %p171 = scmp.lt.s32.totalorder %s17, 3
      %p172 = pnand %p170, %p171
      %p173 = pneg %p172
      // Predicated region
      $region29: #{tpu_custom_call.1} parent=5 // pred_check
        _
      $region30: #{tpu_custom_call.1} parent=5 // pred_check_branch
        %175 = sbr.rel (%p172) target = $region32
      $region31: #{tpu_custom_call.1} parent=5 // pred_region
        %s176 = ssub.s32 %s17, 1
        %p177 = scmp.lt.s32.totalorder %s22, 1
        %s178 = scalar_select %p177, %s22, 1
        %s179 = smul.addr %s178, 72
        %s180 = smul.addr %s179, 4
        %s181 = scalar_lea.vmem %s0, %s180
        %p182 = pneg %p43
        %p183 = pneg %p40
        %p184 = pneg %p64
        %p185 = pneg %p61
        %p186 = pneg %p85
        %p187 = pneg %p82
        %p188 = pneg %p111
        %p189 = pneg %p108
        %s190 = sand.u32 %s98, 1
        %s191 = scalar_lea.sflag [#allocation3], %s190
        %s192 = sand.u32 %s98, 1
        %s193 = smul.addr %s192, 32
        %s194 = scalar_lea.vmem [#allocation2], %s193
        %p195 = pneg %p137
        %p196 = pneg %p134
        %s197 = sand.u32 %s124, 1
        %s198 = scalar_lea.sflag [#allocation5], %s197
        %s199 = sand.u32 %s124, 1
        %s200 = smul.addr %s199, 2
        %s201 = scalar_lea.vmem [#allocation4], %s200
        %p202 = scmp.lt.s32.totalorder %s22, 1
        %s203 = scalar_select %p202, %s22, 1
        %s204 = smul.addr %s203, 72
        %s205 = smul.addr %s204, 4
        %s206 = scalar_lea.vmem %s0, %s205
        %v208 = vld [vmem:[%s206] sm:$0xf]
        %v209 = vld [vmem:[%s206 + $0x4] sm:$0x1]
        %v210 = vld [vmem:[%s206 + $0x8] sm:$0xf]
        %v211 = vld [vmem:[%s206 + $0xc] sm:$0x1]
        %v212 = vld [vmem:[%s206 + $0x10] sm:$0xf]
        %v213 = vld [vmem:[%s206 + $0x14] sm:$0x1]
        %v214 = vld [vmem:[%s206 + $0x18] sm:$0xf]
        %v215 = vld [vmem:[%s206 + $0x1c] sm:$0x1]
        %v216 = vld [vmem:[%s206 + $0x20] sm:$0xf]
        %v217 = vld [vmem:[%s206 + $0x24] sm:$0x1]
        %v218 = vld [vmem:[%s206 + $0x28] sm:$0xf]
        %v219 = vld [vmem:[%s206 + $0x2c] sm:$0x1]
        %v220 = vld [vmem:[%s206 + $0x30] sm:$0xf]
        %v221 = vld [vmem:[%s206 + $0x34] sm:$0x1]
        %v222 = vld [vmem:[%s206 + $0x38] sm:$0xf]
        %v223 = vld [vmem:[%s206 + $0x3c] sm:$0x1]
        %v224 = vld [vmem:[%s206 + $0x40] sm:$0xf]
        %v225 = vld [vmem:[%s206 + $0x44] sm:$0x1]
        %v226 = vld [vmem:[%s206 + $0x48] sm:$0xf]
        %v227 = vld [vmem:[%s206 + $0x50] sm:$0xf]
        %v228 = vld [vmem:[%s206 + $0x58] sm:$0xf]
        %v229 = vld [vmem:[%s206 + $0x60] sm:$0xf]
        %v230 = vld [vmem:[%s206 + $0x68] sm:$0xf]
        %v231 = vld [vmem:[%s206 + $0x70] sm:$0xf]
        %v232 = vld [vmem:[%s206 + $0x78] sm:$0xf]
        %v233 = vld [vmem:[%s206 + $0x80] sm:$0xf]
        %v234 = vld [vmem:[%s206 + $0x88] sm:$0xf]
        %v235 = vld [vmem:[%s206 + $0x90] sm:$0xf]
        %v236 = vld [vmem:[%s206 + $0x94] sm:$0x1]
        %v237 = vld [vmem:[%s206 + $0x98] sm:$0xf]
        %v238 = vld [vmem:[%s206 + $0x9c] sm:$0x1]
        %v239 = vld [vmem:[%s206 + $0xa0] sm:$0xf]
        %v240 = vld [vmem:[%s206 + $0xa4] sm:$0x1]
        %v241 = vld [vmem:[%s206 + $0xa8] sm:$0xf]
        %v242 = vld [vmem:[%s206 + $0xac] sm:$0x1]
        %v243 = vld [vmem:[%s206 + $0xb0] sm:$0xf]
        %v244 = vld [vmem:[%s206 + $0xb4] sm:$0x1]
        %v245 = vld [vmem:[%s206 + $0xb8] sm:$0xf]
        %v246 = vld [vmem:[%s206 + $0xbc] sm:$0x1]
        %v247 = vld [vmem:[%s206 + $0xc0] sm:$0xf]
        %v248 = vld [vmem:[%s206 + $0xc4] sm:$0x1]
        %v249 = vld [vmem:[%s206 + $0xc8] sm:$0xf]
        %v250 = vld [vmem:[%s206 + $0xcc] sm:$0x1]
        %v251 = vld [vmem:[%s206 + $0xd8] sm:$0xf]
        %v252 = vld [vmem:[%s206 + $0xe0] sm:$0xf]
        %v253 = vld [vmem:[%s206 + $0xe8] sm:$0xf]
        %v254 = vld [vmem:[%s206 + $0xf0] sm:$0xf]
        %v255 = vld [vmem:[%s206 + $0xf8] sm:$0xf]
        %v256 = vld [vmem:[%s206 + $0x100] sm:$0xf]
        %v257 = vld [vmem:[%s206 + $0x108] sm:$0xf]
        %v258 = vld [vmem:[%s206 + $0x110] sm:$0xf]
        %v259 = vld [vmem:[%s1] sm:$0x3]
        %s260 = scalar_lea.vmem %s1, 2
        %v261 = vld [vmem:[%s260] sm:$0x3]
        %v270 = vunpack.c.l.b16 %v226
        %v271 = vunpack.c.l.b16 %v227
        %v272 = vunpack.c.l.b16 %v228
        %v273 = vunpack.c.l.b16 %v229
        %v274 = vunpack.c.l.b16 %v230
        %v275 = vunpack.c.l.b16 %v231
        %v276 = vunpack.c.l.b16 %v232
        %v277 = vunpack.c.l.b16 %v233
        %v278 = vpack.c.b16 %v271, %v270
        %v279 = vpack.c.b16 %v273, %v272
        %v280 = vpack.c.b16 %v275, %v274
        %v281 = vpack.c.b16 %v277, %v276
        %vm282 = vcmask 31744
        %v284 = vsel %vm282, %v278, 0
        %v287 = vsel %vm282, %v279, 0
        %v290 = vsel %vm282, %v280, 0
        %v293 = vsel %vm282, %v281, 0
        %vm295 = vcmask 1041408
        %v297 = vsel %vm295, %v261, 0
        %299 = vmatpush.bf16.msra.mxu0 0
        %300 = vmatpush.bf16.msra.mxu0 0
        %301 = vmatpush.bf16.msra.mxu0 0
        %302 = vmatpush.bf16.msra.mxu0 0
        %303 = vmatpush.bf16.msra.mxu0 0
        %304 = vmatpush.bf16.msra.mxu0 0
        %305 = vmatpush.bf16.msra.mxu0 0
        %306 = vmatpush.bf16.msra.mxu0 %v297
        %307 = vmatmul.bf16.gmra.mxu0 %v284
        %v308 = vpop.f32.mrf.mxu0
        %v309 = vadd.f32 0.0, %v308
        %v310 = vpop.f32.mrf.mxu0
        %v311 = vadd.f32 0.0, %v310
        %312 = vmatmul.bf16.gmra.mxu0 %v287
        %v313 = vpop.f32.mrf.mxu0
        %v314 = vadd.f32 0.0, %v313
        %v315 = vpop.f32.mrf.mxu0
        %v316 = vadd.f32 0.0, %v315
        %317 = vmatmul.bf16.gmra.mxu0 %v290
        %v318 = vpop.f32.mrf.mxu0
        %v319 = vadd.f32 0.0, %v318
        %v320 = vpop.f32.mrf.mxu0
        %v321 = vadd.f32 0.0, %v320
        %322 = vmatmul.bf16.gmra.mxu0 %v293
        %v323 = vpop.f32.mrf.mxu0
        %v324 = vadd.f32 0.0, %v323
        %v325 = vpop.f32.mrf.mxu0
        %v326 = vadd.f32 0.0, %v325
        %327 = vdwg.mxu0
        %v336 = vunpack.c.l.b16 %v208
        %v337 = vunpack.c.l.b16 %v210
        %v338 = vunpack.c.l.b16 %v212
        %v339 = vunpack.c.l.b16 %v214
        %v340 = vunpack.c.l.b16 %v216
        %v341 = vunpack.c.l.b16 %v218
        %v342 = vunpack.c.l.b16 %v220
        %v343 = vunpack.c.l.b16 %v222
        %v344 = vpack.c.b16 %v337, %v336
        %v345 = vpack.c.b16 %v339, %v338
        %v346 = vpack.c.b16 %v341, %v340
        %v347 = vpack.c.b16 %v343, %v342
        %v349 = vsel %vm282, %v344, 0
        %v352 = vsel %vm282, %v345, 0
        %v355 = vsel %vm282, %v346, 0
        %v358 = vsel %vm282, %v347, 0
        %v361 = vsel %vm295, %v259, 0
        %363 = vmatpush.bf16.msra.mxu0 0
        %364 = vmatpush.bf16.msra.mxu0 0
        %365 = vmatpush.bf16.msra.mxu0 0
        %366 = vmatpush.bf16.msra.mxu0 0
        %367 = vmatpush.bf16.msra.mxu0 0
        %368 = vmatpush.bf16.msra.mxu0 0
        %369 = vmatpush.bf16.msra.mxu0 0
        %370 = vmatpush.bf16.msra.mxu0 %v361
        %371 = vmatmul.bf16.gmra.mxu0 %v349
        %v372 = vpop.f32.mrf.mxu0
        %v373 = vadd.f32 %v309, %v372
        %v374 = vpop.f32.mrf.mxu0
        %v375 = vadd.f32 %v311, %v374
        %376 = vmatmul.bf16.gmra.mxu0 %v352
        %v377 = vpop.f32.mrf.mxu0
        %v378 = vadd.f32 %v314, %v377
        %v379 = vpop.f32.mrf.mxu0
        %v380 = vadd.f32 %v316, %v379
        %381 = vmatmul.bf16.gmra.mxu0 %v355
        %v382 = vpop.f32.mrf.mxu0
        %v383 = vadd.f32 %v319, %v382
        %v384 = vpop.f32.mrf.mxu0
        %v385 = vadd.f32 %v321, %v384
        %386 = vmatmul.bf16.gmra.mxu0 %v358
        %v387 = vpop.f32.mrf.mxu0
        %v388 = vadd.f32 %v324, %v387
        %v389 = vpop.f32.mrf.mxu0
        %v390 = vadd.f32 %v326, %v389
        %391 = vdwg.mxu0
        %vm392 = vsmask.f32 3328
        %vm393 = vsmask.f32 7440
        %vm394 = vmor %vm392, %vm393
        %v396 = vshrl.u32 %v208, 16
        %v398 = vrot.slane %v396, 4
        %v399 = vshll.u32 %v208, 16
        %v401 = vrot.slane %v399, 5
        %v402 = vor.u32 %v398, %v401
        %v403 = vrot.slane %v402, 4
        %v405 = vshll.u32 %v209, 16
        %v407 = vrot.slane %v405, 5
        %v408 = vsel %vm394, %v403, %v407
        %v410 = vshrl.u32 %v210, 16
        %v412 = vrot.slane %v410, 4
        %v413 = vshll.u32 %v210, 16
        %v415 = vrot.slane %v413, 5
        %v416 = vor.u32 %v412, %v415
        %v417 = vrot.slane %v416, 4
        %v419 = vshll.u32 %v211, 16
        %v421 = vrot.slane %v419, 5
        %v422 = vsel %vm394, %v417, %v421
        %v424 = vshrl.u32 %v212, 16
        %v426 = vrot.slane %v424, 4
        %v427 = vshll.u32 %v212, 16
        %v429 = vrot.slane %v427, 5
        %v430 = vor.u32 %v426, %v429
        %v431 = vrot.slane %v430, 4
        %v433 = vshll.u32 %v213, 16
        %v435 = vrot.slane %v433, 5
        %v436 = vsel %vm394, %v431, %v435
        %v438 = vshrl.u32 %v214, 16
        %v440 = vrot.slane %v438, 4
        %v441 = vshll.u32 %v214, 16
        %v443 = vrot.slane %v441, 5
        %v444 = vor.u32 %v440, %v443
        %v445 = vrot.slane %v444, 4
        %v447 = vshll.u32 %v215, 16
        %v449 = vrot.slane %v447, 5
        %v450 = vsel %vm394, %v445, %v449
        %v452 = vshrl.u32 %v216, 16
        %v454 = vrot.slane %v452, 4
        %v455 = vshll.u32 %v216, 16
        %v457 = vrot.slane %v455, 5
        %v458 = vor.u32 %v454, %v457
        %v459 = vrot.slane %v458, 4
        %v461 = vshll.u32 %v217, 16
        %v463 = vrot.slane %v461, 5
        %v464 = vsel %vm394, %v459, %v463
        %v466 = vshrl.u32 %v218, 16
        %v468 = vrot.slane %v466, 4
        %v469 = vshll.u32 %v218, 16
        %v471 = vrot.slane %v469, 5
        %v472 = vor.u32 %v468, %v471
        %v473 = vrot.slane %v472, 4
        %v475 = vshll.u32 %v219, 16
        %v477 = vrot.slane %v475, 5
        %v478 = vsel %vm394, %v473, %v477
        %v480 = vshrl.u32 %v220, 16
        %v482 = vrot.slane %v480, 4
        %v483 = vshll.u32 %v220, 16
        %v485 = vrot.slane %v483, 5
        %v486 = vor.u32 %v482, %v485
        %v487 = vrot.slane %v486, 4
        %v489 = vshll.u32 %v221, 16
        %v491 = vrot.slane %v489, 5
        %v492 = vsel %vm394, %v487, %v491
        %v494 = vshrl.u32 %v222, 16
        %v496 = vrot.slane %v494, 4
        %v497 = vshll.u32 %v222, 16
        %v499 = vrot.slane %v497, 5
        %v500 = vor.u32 %v496, %v499
        %v501 = vrot.slane %v500, 4
        %v503 = vshll.u32 %v223, 16
        %v505 = vrot.slane %v503, 5
        %v506 = vsel %vm394, %v501, %v505
        %s507 = scalar_lea.vmem %s1, 4
        %v508 = vld [vmem:[%s507] sm:$0x3]
        %v509 = vunpack.c.l.b16 %v408
        %v510 = vunpack.c.l.b16 %v422
        %v511 = vunpack.c.l.b16 %v436
        %v512 = vunpack.c.l.b16 %v450
        %v513 = vunpack.c.l.b16 %v464
        %v514 = vunpack.c.l.b16 %v478
        %v515 = vunpack.c.l.b16 %v492
        %v516 = vunpack.c.l.b16 %v506
        %v517 = vpack.c.b16 %v510, %v509
        %v518 = vpack.c.b16 %v512, %v511
        %v519 = vpack.c.b16 %v514, %v513
        %v520 = vpack.c.b16 %v516, %v515
        %v522 = vsel %vm282, %v517, 0
        %v525 = vsel %vm282, %v518, 0
        %v528 = vsel %vm282, %v519, 0
        %v531 = vsel %vm282, %v520, 0
        %v534 = vsel %vm295, %v508, 0
        %536 = vmatpush.bf16.msra.mxu0 0
        %537 = vmatpush.bf16.msra.mxu0 0
        %538 = vmatpush.bf16.msra.mxu0 0
        %539 = vmatpush.bf16.msra.mxu0 0
        %540 = vmatpush.bf16.msra.mxu0 0
        %541 = vmatpush.bf16.msra.mxu0 0
        %542 = vmatpush.bf16.msra.mxu0 0
        %543 = vmatpush.bf16.msra.mxu0 %v534
        %544 = vmatmul.bf16.gmra.mxu0 %v522
        %v545 = vpop.f32.mrf.mxu0
        %v546 = vadd.f32 0.0, %v545
        %v547 = vpop.f32.mrf.mxu0
        %v548 = vadd.f32 0.0, %v547
        %549 = vmatmul.bf16.gmra.mxu0 %v525
        %v550 = vpop.f32.mrf.mxu0
        %v551 = vadd.f32 0.0, %v550
        %v552 = vpop.f32.mrf.mxu0
        %v553 = vadd.f32 0.0, %v552
        %554 = vmatmul.bf16.gmra.mxu0 %v528
        %v555 = vpop.f32.mrf.mxu0
        %v556 = vadd.f32 0.0, %v555
        %v557 = vpop.f32.mrf.mxu0
        %v558 = vadd.f32 0.0, %v557
        %559 = vmatmul.bf16.gmra.mxu0 %v531
        %v560 = vpop.f32.mrf.mxu0
        %v561 = vadd.f32 0.0, %v560
        %v562 = vpop.f32.mrf.mxu0
        %v563 = vadd.f32 0.0, %v562
        %564 = vdwg.mxu0
        %v565 = vadd.f32 %v373, %v546
        %v566 = vadd.f32 %v375, %v548
        %v567 = vadd.f32 %v378, %v551
        %v568 = vadd.f32 %v380, %v553
        %v569 = vadd.f32 %v383, %v556
        %v570 = vadd.f32 %v385, %v558
        %v571 = vadd.f32 %v388, %v561
        %v572 = vadd.f32 %v390, %v563
        %s573 = scalar_lea.vmem %s1, 6
        %v574 = vld [vmem:[%s573] sm:$0x3]
        %v583 = vunpack.c.l.b16 %v235
        %v584 = vunpack.c.l.b16 %v237
        %v585 = vunpack.c.l.b16 %v239
        %v586 = vunpack.c.l.b16 %v241
        %v587 = vunpack.c.l.b16 %v243
        %v588 = vunpack.c.l.b16 %v245
        %v589 = vunpack.c.l.b16 %v247
        %v590 = vunpack.c.l.b16 %v249
        %v591 = vpack.c.b16 %v584, %v583
        %v592 = vpack.c.b16 %v586, %v585
        %v593 = vpack.c.b16 %v588, %v587
        %v594 = vpack.c.b16 %v590, %v589
        %v596 = vsel %vm282, %v591, 0
        %v599 = vsel %vm282, %v592, 0
        %v602 = vsel %vm282, %v593, 0
        %v605 = vsel %vm282, %v594, 0
        %v608 = vsel %vm295, %v574, 0
        %610 = vmatpush.bf16.msra.mxu0 0
        %611 = vmatpush.bf16.msra.mxu0 0
        %612 = vmatpush.bf16.msra.mxu0 0
        %613 = vmatpush.bf16.msra.mxu0 0
        %614 = vmatpush.bf16.msra.mxu0 0
        %615 = vmatpush.bf16.msra.mxu0 0
        %616 = vmatpush.bf16.msra.mxu0 0
        %617 = vmatpush.bf16.msra.mxu0 %v608
        %618 = vmatmul.bf16.gmra.mxu0 %v596
        %v619 = vpop.f32.mrf.mxu0
        %v620 = vadd.f32 0.0, %v619
        %v621 = vpop.f32.mrf.mxu0
        %v622 = vadd.f32 0.0, %v621
        %623 = vmatmul.bf16.gmra.mxu0 %v599
        %v624 = vpop.f32.mrf.mxu0
        %v625 = vadd.f32 0.0, %v624
        %v626 = vpop.f32.mrf.mxu0
        %v627 = vadd.f32 0.0, %v626
        %628 = vmatmul.bf16.gmra.mxu0 %v602
        %v629 = vpop.f32.mrf.mxu0
        %v630 = vadd.f32 0.0, %v629
        %v631 = vpop.f32.mrf.mxu0
        %v632 = vadd.f32 0.0, %v631
        %633 = vmatmul.bf16.gmra.mxu0 %v605
        %v634 = vpop.f32.mrf.mxu0
        %v635 = vadd.f32 0.0, %v634
        %v636 = vpop.f32.mrf.mxu0
        %v637 = vadd.f32 0.0, %v636
        %638 = vdwg.mxu0
        %v639 = vadd.f32 %v565, %v620
        %v640 = vadd.f32 %v566, %v622
        %v641 = vadd.f32 %v567, %v625
        %v642 = vadd.f32 %v568, %v627
        %v643 = vadd.f32 %v569, %v630
        %v644 = vadd.f32 %v570, %v632
        %v645 = vadd.f32 %v571, %v635
        %v646 = vadd.f32 %v572, %v637
        %s647 = scalar_lea.vmem %s1, 8
        %v648 = vld [vmem:[%s647] sm:$0x3]
        %v657 = vunpack.c.l.b16 %v251
        %v658 = vunpack.c.l.b16 %v252
        %v659 = vunpack.c.l.b16 %v253
        %v660 = vunpack.c.l.b16 %v254
        %v661 = vunpack.c.l.b16 %v255
        %v662 = vunpack.c.l.b16 %v256
        %v663 = vunpack.c.l.b16 %v257
        %v664 = vunpack.c.l.b16 %v258
        %v665 = vpack.c.b16 %v658, %v657
        %v666 = vpack.c.b16 %v660, %v659
        %v667 = vpack.c.b16 %v662, %v661
        %v668 = vpack.c.b16 %v664, %v663
        %v670 = vsel %vm282, %v665, 0
        %v673 = vsel %vm282, %v666, 0
        %v676 = vsel %vm282, %v667, 0
        %v679 = vsel %vm282, %v668, 0
        %v682 = vsel %vm295, %v648, 0
        %684 = vmatpush.bf16.msra.mxu0 0
        %685 = vmatpush.bf16.msra.mxu0 0
        %686 = vmatpush.bf16.msra.mxu0 0
        %687 = vmatpush.bf16.msra.mxu0 0
        %688 = vmatpush.bf16.msra.mxu0 0
        %689 = vmatpush.bf16.msra.mxu0 0
        %690 = vmatpush.bf16.msra.mxu0 0
        %691 = vmatpush.bf16.msra.mxu0 %v682
        %692 = vmatmul.bf16.gmra.mxu0 %v670
        %v693 = vpop.f32.mrf.mxu0
        %v694 = vadd.f32 0.0, %v693
        %v695 = vpop.f32.mrf.mxu0
        %v696 = vadd.f32 0.0, %v695
        %697 = vmatmul.bf16.gmra.mxu0 %v673
        %v698 = vpop.f32.mrf.mxu0
        %v699 = vadd.f32 0.0, %v698
        %v700 = vpop.f32.mrf.mxu0
        %v701 = vadd.f32 0.0, %v700
        %702 = vmatmul.bf16.gmra.mxu0 %v676
        %v703 = vpop.f32.mrf.mxu0
        %v704 = vadd.f32 0.0, %v703
        %v705 = vpop.f32.mrf.mxu0
        %v706 = vadd.f32 0.0, %v705
        %707 = vmatmul.bf16.gmra.mxu0 %v679
        %v708 = vpop.f32.mrf.mxu0
        %v709 = vadd.f32 0.0, %v708
        %v710 = vpop.f32.mrf.mxu0
        %v711 = vadd.f32 0.0, %v710
        %712 = vdwg.mxu0
        %v713 = vadd.f32 %v639, %v694
        %v714 = vadd.f32 %v640, %v696
        %v715 = vadd.f32 %v641, %v699
        %v716 = vadd.f32 %v642, %v701
        %v717 = vadd.f32 %v643, %v704
        %v718 = vadd.f32 %v644, %v706
        %v719 = vadd.f32 %v645, %v709
        %v720 = vadd.f32 %v646, %v711
        %v722 = vshrl.u32 %v235, 16
        %v724 = vrot.slane %v722, 4
        %v725 = vshll.u32 %v235, 16
        %v727 = vrot.slane %v725, 5
        %v728 = vor.u32 %v724, %v727
        %v729 = vrot.slane %v728, 4
        %v731 = vshll.u32 %v236, 16
        %v733 = vrot.slane %v731, 5
        %v734 = vsel %vm394, %v729, %v733
        %v736 = vshrl.u32 %v237, 16
        %v738 = vrot.slane %v736, 4
        %v739 = vshll.u32 %v237, 16
        %v741 = vrot.slane %v739, 5
        %v742 = vor.u32 %v738, %v741
        %v743 = vrot.slane %v742, 4
        %v745 = vshll.u32 %v238, 16
        %v747 = vrot.slane %v745, 5
        %v748 = vsel %vm394, %v743, %v747
        %v750 = vshrl.u32 %v239, 16
        %v752 = vrot.slane %v750, 4
        %v753 = vshll.u32 %v239, 16
        %v755 = vrot.slane %v753, 5
        %v756 = vor.u32 %v752, %v755
        %v757 = vrot.slane %v756, 4
        %v759 = vshll.u32 %v240, 16
        %v761 = vrot.slane %v759, 5
        %v762 = vsel %vm394, %v757, %v761
        %v764 = vshrl.u32 %v241, 16
        %v766 = vrot.slane %v764, 4
        %v767 = vshll.u32 %v241, 16
        %v769 = vrot.slane %v767, 5
        %v770 = vor.u32 %v766, %v769
        %v771 = vrot.slane %v770, 4
        %v773 = vshll.u32 %v242, 16
        %v775 = vrot.slane %v773, 5
        %v776 = vsel %vm394, %v771, %v775
        %v778 = vshrl.u32 %v243, 16
        %v780 = vrot.slane %v778, 4
        %v781 = vshll.u32 %v243, 16
        %v783 = vrot.slane %v781, 5
        %v784 = vor.u32 %v780, %v783
        %v785 = vrot.slane %v784, 4
        %v787 = vshll.u32 %v244, 16
        %v789 = vrot.slane %v787, 5
        %v790 = vsel %vm394, %v785, %v789
        %v792 = vshrl.u32 %v245, 16
        %v794 = vrot.slane %v792, 4
        %v795 = vshll.u32 %v245, 16
        %v797 = vrot.slane %v795, 5
        %v798 = vor.u32 %v794, %v797
        %v799 = vrot.slane %v798, 4
        %v801 = vshll.u32 %v246, 16
        %v803 = vrot.slane %v801, 5
        %v804 = vsel %vm394, %v799, %v803
        %v806 = vshrl.u32 %v247, 16
        %v808 = vrot.slane %v806, 4
        %v809 = vshll.u32 %v247, 16
        %v811 = vrot.slane %v809, 5
        %v812 = vor.u32 %v808, %v811
        %v813 = vrot.slane %v812, 4
        %v815 = vshll.u32 %v248, 16
        %v817 = vrot.slane %v815, 5
        %v818 = vsel %vm394, %v813, %v817
        %v820 = vshrl.u32 %v249, 16
        %v822 = vrot.slane %v820, 4
        %v823 = vshll.u32 %v249, 16
        %v825 = vrot.slane %v823, 5
        %v826 = vor.u32 %v822, %v825
        %v827 = vrot.slane %v826, 4
        %v829 = vshll.u32 %v250, 16
        %v831 = vrot.slane %v829, 5
        %v832 = vsel %vm394, %v827, %v831
        %s833 = scalar_lea.vmem %s1, 10
        %v834 = vld [vmem:[%s833] sm:$0x3]
        %v835 = vunpack.c.l.b16 %v734
        %v836 = vunpack.c.l.b16 %v748
        %v837 = vunpack.c.l.b16 %v762
        %v838 = vunpack.c.l.b16 %v776
        %v839 = vunpack.c.l.b16 %v790
        %v840 = vunpack.c.l.b16 %v804
        %v841 = vunpack.c.l.b16 %v818
        %v842 = vunpack.c.l.b16 %v832
        %v843 = vpack.c.b16 %v836, %v835
        %v844 = vpack.c.b16 %v838, %v837
        %v845 = vpack.c.b16 %v840, %v839
        %v846 = vpack.c.b16 %v842, %v841
        %v848 = vsel %vm282, %v843, 0
        %v851 = vsel %vm282, %v844, 0
        %v854 = vsel %vm282, %v845, 0
        %v857 = vsel %vm282, %v846, 0
        %v860 = vsel %vm295, %v834, 0
        %862 = vmatpush.bf16.msra.mxu0 0
        %863 = vmatpush.bf16.msra.mxu0 0
        %864 = vmatpush.bf16.msra.mxu0 0
        %865 = vmatpush.bf16.msra.mxu0 0
        %866 = vmatpush.bf16.msra.mxu0 0
        %867 = vmatpush.bf16.msra.mxu0 0
        %868 = vmatpush.bf16.msra.mxu0 0
        %869 = vmatpush.bf16.msra.mxu0 %v860
        %870 = vmatmul.bf16.gmra.mxu0 %v848
        %v871 = vpop.f32.mrf.mxu0
        %v872 = vadd.f32 0.0, %v871
        %v873 = vpop.f32.mrf.mxu0
        %v874 = vadd.f32 0.0, %v873
        %875 = vmatmul.bf16.gmra.mxu0 %v851
        %v876 = vpop.f32.mrf.mxu0
        %v877 = vadd.f32 0.0, %v876
        %v878 = vpop.f32.mrf.mxu0
        %v879 = vadd.f32 0.0, %v878
        %880 = vmatmul.bf16.gmra.mxu0 %v854
        %v881 = vpop.f32.mrf.mxu0
        %v882 = vadd.f32 0.0, %v881
        %v883 = vpop.f32.mrf.mxu0
        %v884 = vadd.f32 0.0, %v883
        %885 = vmatmul.bf16.gmra.mxu0 %v857
        %v886 = vpop.f32.mrf.mxu0
        %v887 = vadd.f32 0.0, %v886
        %v888 = vpop.f32.mrf.mxu0
        %v889 = vadd.f32 0.0, %v888
        %890 = vdwg.mxu0
        %v891 = vadd.f32 %v713, %v872
        %v892 = vadd.f32 %v714, %v874
        %v893 = vadd.f32 %v715, %v877
        %v894 = vadd.f32 %v716, %v879
        %v895 = vadd.f32 %v717, %v882
        %v896 = vadd.f32 %v718, %v884
        %v897 = vadd.f32 %v719, %v887
        %v898 = vadd.f32 %v720, %v889
        %s899 = scalar_lea.vmem %s1, 12
        %v900 = vld [vmem:[%s899] sm:$0x3]
        %v902 = vunpack.c.l.b16 %v224
        %v903 = vpack.c.b16 %v338, %v337
        %v904 = vpack.c.b16 %v340, %v339
        %v905 = vpack.c.b16 %v342, %v341
        %v906 = vpack.c.b16 %v902, %v343
        %v908 = vsel %vm282, %v903, 0
        %v911 = vsel %vm282, %v904, 0
        %v914 = vsel %vm282, %v905, 0
        %v917 = vsel %vm282, %v906, 0
        %v920 = vsel %vm295, %v900, 0
        %922 = vmatpush.bf16.msra.mxu0 0
        %923 = vmatpush.bf16.msra.mxu0 0
        %924 = vmatpush.bf16.msra.mxu0 0
        %925 = vmatpush.bf16.msra.mxu0 0
        %926 = vmatpush.bf16.msra.mxu0 0
        %927 = vmatpush.bf16.msra.mxu0 0
        %928 = vmatpush.bf16.msra.mxu0 0
        %929 = vmatpush.bf16.msra.mxu0 %v920
        %930 = vmatmul.bf16.gmra.mxu0 %v908
        %v931 = vpop.f32.mrf.mxu0
        %v932 = vadd.f32 0.0, %v931
        %v933 = vpop.f32.mrf.mxu0
        %v934 = vadd.f32 0.0, %v933
        %935 = vmatmul.bf16.gmra.mxu0 %v911
        %v936 = vpop.f32.mrf.mxu0
        %v937 = vadd.f32 0.0, %v936
        %v938 = vpop.f32.mrf.mxu0
        %v939 = vadd.f32 0.0, %v938
        %940 = vmatmul.bf16.gmra.mxu0 %v914
        %v941 = vpop.f32.mrf.mxu0
        %v942 = vadd.f32 0.0, %v941
        %v943 = vpop.f32.mrf.mxu0
        %v944 = vadd.f32 0.0, %v943
        %945 = vmatmul.bf16.gmra.mxu0 %v917
        %v946 = vpop.f32.mrf.mxu0
        %v947 = vadd.f32 0.0, %v946
        %v948 = vpop.f32.mrf.mxu0
        %v949 = vadd.f32 0.0, %v948
        %950 = vdwg.mxu0
        %v951 = vadd.f32 %v891, %v932
        %v952 = vadd.f32 %v892, %v934
        %v953 = vadd.f32 %v893, %v937
        %v954 = vadd.f32 %v894, %v939
        %v955 = vadd.f32 %v895, %v942
        %v956 = vadd.f32 %v896, %v944
        %v957 = vadd.f32 %v897, %v947
        %v958 = vadd.f32 %v898, %v949
        %s959 = scalar_lea.vmem %s1, 14
        %v960 = vld [vmem:[%s959] sm:$0x3]
        %v962 = vunpack.c.l.b16 %v234
        %v963 = vpack.c.b16 %v272, %v271
        %v964 = vpack.c.b16 %v274, %v273
        %v965 = vpack.c.b16 %v276, %v275
        %v966 = vpack.c.b16 %v962, %v277
        %v968 = vsel %vm282, %v963, 0
        %v971 = vsel %vm282, %v964, 0
        %v974 = vsel %vm282, %v965, 0
        %v977 = vsel %vm282, %v966, 0
        %v980 = vsel %vm295, %v960, 0
        %982 = vmatpush.bf16.msra.mxu0 0
        %983 = vmatpush.bf16.msra.mxu0 0
        %984 = vmatpush.bf16.msra.mxu0 0
        %985 = vmatpush.bf16.msra.mxu0 0
        %986 = vmatpush.bf16.msra.mxu0 0
        %987 = vmatpush.bf16.msra.mxu0 0
        %988 = vmatpush.bf16.msra.mxu0 0
        %989 = vmatpush.bf16.msra.mxu0 %v980
        %990 = vmatmul.bf16.gmra.mxu0 %v968
        %v991 = vpop.f32.mrf.mxu0
        %v992 = vadd.f32 0.0, %v991
        %v993 = vpop.f32.mrf.mxu0
        %v994 = vadd.f32 0.0, %v993
        %995 = vmatmul.bf16.gmra.mxu0 %v971
        %v996 = vpop.f32.mrf.mxu0
        %v997 = vadd.f32 0.0, %v996
        %v998 = vpop.f32.mrf.mxu0
        %v999 = vadd.f32 0.0, %v998
        %1000 = vmatmul.bf16.gmra.mxu0 %v974
        %v1001 = vpop.f32.mrf.mxu0
        %v1002 = vadd.f32 0.0, %v1001
        %v1003 = vpop.f32.mrf.mxu0
        %v1004 = vadd.f32 0.0, %v1003
        %1005 = vmatmul.bf16.gmra.mxu0 %v977
        %v1006 = vpop.f32.mrf.mxu0
        %v1007 = vadd.f32 0.0, %v1006
        %v1008 = vpop.f32.mrf.mxu0
        %v1009 = vadd.f32 0.0, %v1008
        %1010 = vdwg.mxu0
        %v1011 = vadd.f32 %v951, %v992
        %v1012 = vadd.f32 %v952, %v994
        %v1013 = vadd.f32 %v953, %v997
        %v1014 = vadd.f32 %v954, %v999
        %v1015 = vadd.f32 %v955, %v1002
        %v1016 = vadd.f32 %v956, %v1004
        %v1017 = vadd.f32 %v957, %v1007
        %v1018 = vadd.f32 %v958, %v1009
        %v1020 = vshrl.u32 %v224, 16
        %v1022 = vrot.slane %v1020, 4
        %v1023 = vshll.u32 %v224, 16
        %v1025 = vrot.slane %v1023, 5
        %v1026 = vor.u32 %v1022, %v1025
        %v1027 = vrot.slane %v1026, 4
        %v1029 = vshll.u32 %v225, 16
        %v1031 = vrot.slane %v1029, 5
        %v1032 = vsel %vm394, %v1027, %v1031
        %s1033 = scalar_lea.vmem %s1, 16
        %v1034 = vld [vmem:[%s1033] sm:$0x3]
        %v1035 = vunpack.c.l.b16 %v1032
        %v1036 = vpack.c.b16 %v511, %v510
        %v1037 = vpack.c.b16 %v513, %v512
        %v1038 = vpack.c.b16 %v515, %v514
        %v1039 = vpack.c.b16 %v1035, %v516
        %v1041 = vsel %vm282, %v1036, 0
        %v1044 = vsel %vm282, %v1037, 0
        %v1047 = vsel %vm282, %v1038, 0
        %v1050 = vsel %vm282, %v1039, 0
        %v1053 = vsel %vm295, %v1034, 0
        %1055 = vmatpush.bf16.msra.mxu0 0
        %1056 = vmatpush.bf16.msra.mxu0 0
        %1057 = vmatpush.bf16.msra.mxu0 0
        %1058 = vmatpush.bf16.msra.mxu0 0
        %1059 = vmatpush.bf16.msra.mxu0 0
        %1060 = vmatpush.bf16.msra.mxu0 0
        %1061 = vmatpush.bf16.msra.mxu0 0
        %1062 = vmatpush.bf16.msra.mxu0 %v1053
        %1063 = vmatmul.bf16.gmra.mxu0 %v1041
        %v1064 = vpop.f32.mrf.mxu0
        %v1065 = vadd.f32 0.0, %v1064
        %v1066 = vpop.f32.mrf.mxu0
        %v1067 = vadd.f32 0.0, %v1066
        %1068 = vmatmul.bf16.gmra.mxu0 %v1044
        %v1069 = vpop.f32.mrf.mxu0
        %v1070 = vadd.f32 0.0, %v1069
        %v1071 = vpop.f32.mrf.mxu0
        %v1072 = vadd.f32 0.0, %v1071
        %1073 = vmatmul.bf16.gmra.mxu0 %v1047
        %v1074 = vpop.f32.mrf.mxu0
        %v1075 = vadd.f32 0.0, %v1074
        %v1076 = vpop.f32.mrf.mxu0
        %v1077 = vadd.f32 0.0, %v1076
        %1078 = vmatmul.bf16.gmra.mxu0 %v1050
        %v1079 = vpop.f32.mrf.mxu0
        %v1080 = vadd.f32 0.0, %v1079
        %v1081 = vpop.f32.mrf.mxu0
        %v1082 = vadd.f32 0.0, %v1081
        %1083 = vdwg.mxu0
        %v1084 = vadd.f32 %v1011, %v1065
        %v1085 = vadd.f32 %v1012, %v1067
        %v1086 = vadd.f32 %v1013, %v1070
        %v1087 = vadd.f32 %v1014, %v1072
        %v1088 = vadd.f32 %v1015, %v1075
        %v1089 = vadd.f32 %v1016, %v1077
        %v1090 = vadd.f32 %v1017, %v1080
        %v1091 = vadd.f32 %v1018, %v1082
        %v1092 = vld [vmem:[%s2] sm:$0x1]
        %v1094 = vperm.slane %v1092, 0
        %v1096 = vadd.f32 %v1084, %v1094
        %v1097 = vadd.f32 %v1085, %v1094
        %v1098 = vadd.f32 %v1086, %v1094
        %v1099 = vadd.f32 %v1087, %v1094
        %v1100 = vadd.f32 %v1088, %v1094
        %v1101 = vadd.f32 %v1089, %v1094
        %v1102 = vadd.f32 %v1090, %v1094
        %v1103 = vadd.f32 %v1091, %v1094
        %v1104 = vmax.f32 %v1096, 0.0
        %v1105 = vmax.f32 %v1097, 0.0
        %v1106 = vmax.f32 %v1098, 0.0
        %v1107 = vmax.f32 %v1099, 0.0
        %v1108 = vmax.f32 %v1100, 0.0
        %v1109 = vmax.f32 %v1101, 0.0
        %v1110 = vmax.f32 %v1102, 0.0
        %v1111 = vmax.f32 %v1103, 0.0
        %vm1112 = vcmask 64512
        %v1113 = vsel %vm1112, %v1104, 0.0
        %v1114 = vsel %vm1112, %v1105, 0.0
        %v1115 = vadd.f32 %v1113, %v1114
        %v1116 = vsel %vm1112, %v1106, 0.0
        %v1117 = vadd.f32 %v1115, %v1116
        %v1118 = vsel %vm1112, %v1107, 0.0
        %v1119 = vadd.f32 %v1117, %v1118
        %v1120 = vsel %vm1112, %v1108, 0.0
        %v1121 = vadd.f32 %v1119, %v1120
        %v1122 = vsel %vm1112, %v1109, 0.0
        %v1123 = vadd.f32 %v1121, %v1122
        %v1124 = vsel %vm1112, %v1110, 0.0
        %v1125 = vadd.f32 %v1123, %v1124
        %v1126 = vsel %vm1112, %v1111, 0.0
        %v1127 = vadd.f32 %v1125, %v1126
        %v1128 = vrot.slane %v1127, 4
        %v1129 = vadd.f32 %v1127, %v1128
        %v1130 = vrot.slane %v1129, 2
        %v1131 = vadd.f32 %v1129, %v1130
        %v1132 = vrot.slane %v1131, 1
        %v1133 = vadd.f32 %v1131, %v1132
        %v1134 = vrcp.pop 64.0
        %v1135 = vmul.f32 64.0, %v1134
        %v1136 = vsub.f32 1.0, %v1135
        %v1137 = vmul.f32 %v1134, %v1136
        %v1138 = vadd.f32 %v1134, %v1137
        %vm1139 = vweird.f32 %v1134
        %v1140 = vsel %vm1139, %v1134, %v1138
        %v1141 = vmul.f32 %v1133, %v1140
        %v1142 = vsub.f32 %v1104, %v1141
        %v1143 = vsub.f32 %v1105, %v1141
        %v1144 = vsub.f32 %v1106, %v1141
        %v1145 = vsub.f32 %v1107, %v1141
        %v1146 = vsub.f32 %v1108, %v1141
        %v1147 = vsub.f32 %v1109, %v1141
        %v1148 = vsub.f32 %v1110, %v1141
        %v1149 = vsub.f32 %v1111, %v1141
        %vm1150 = vcmask 57344
        %1151 = vst.msk [vmem:[%s201] sm:$0x1] %vm1150, %v1133
        %v1152 = vmul.f32 %v1142, %v1142
        %v1153 = vmul.f32 %v1143, %v1143
        %v1154 = vmul.f32 %v1144, %v1144
        %v1155 = vmul.f32 %v1145, %v1145
        %v1156 = vmul.f32 %v1146, %v1146
        %v1157 = vmul.f32 %v1147, %v1147
        %v1158 = vmul.f32 %v1148, %v1148
        %v1159 = vmul.f32 %v1149, %v1149
        %v1160 = vsel %vm1112, %v1152, 0.0
        %v1161 = vsel %vm1112, %v1153, 0.0
        %v1162 = vadd.f32 %v1160, %v1161
        %v1163 = vsel %vm1112, %v1154, 0.0
        %v1164 = vadd.f32 %v1162, %v1163
        %v1165 = vsel %vm1112, %v1155, 0.0
        %v1166 = vadd.f32 %v1164, %v1165
        %v1167 = vsel %vm1112, %v1156, 0.0
        %v1168 = vadd.f32 %v1166, %v1167
        %v1169 = vsel %vm1112, %v1157, 0.0
        %v1170 = vadd.f32 %v1168, %v1169
        %v1171 = vsel %vm1112, %v1158, 0.0
        %v1172 = vadd.f32 %v1170, %v1171
        %v1173 = vsel %vm1112, %v1159, 0.0
        %v1174 = vadd.f32 %v1172, %v1173
        %v1175 = vrot.slane %v1174, 4
        %v1176 = vadd.f32 %v1174, %v1175
        %v1177 = vrot.slane %v1176, 2
        %v1178 = vadd.f32 %v1176, %v1177
        %v1179 = vrot.slane %v1178, 1
        %v1180 = vadd.f32 %v1178, %v1179
        %1181 = vst.msk [vmem:[%s201 + $0x1] sm:$0x1] %vm1150, %v1180
        %v1182 = vpack.c.bf16 %v1104, %v1104
        %v1183 = vpack.c.bf16 %v1105, %v1105
        %v1184 = vpack.c.bf16 %v1106, %v1106
        %v1185 = vpack.c.bf16 %v1107, %v1107
        %v1186 = vpack.c.bf16 %v1108, %v1108
        %v1187 = vpack.c.bf16 %v1109, %v1109
        %v1188 = vpack.c.bf16 %v1110, %v1110
        %v1189 = vpack.c.bf16 %v1111, %v1111
        %vm1190 = vcmask 60416
        %1191 = vst.msk [vmem:[%s194] sm:$0xf] %vm1190, %v1182
        %1192 = vst.msk [vmem:[%s194 + $0x4] sm:$0xf] %vm1190, %v1183
        %1193 = vst.msk [vmem:[%s194 + $0x8] sm:$0xf] %vm1190, %v1184
        %1194 = vst.msk [vmem:[%s194 + $0xc] sm:$0xf] %vm1190, %v1185
        %1195 = vst.msk [vmem:[%s194 + $0x10] sm:$0xf] %vm1190, %v1186
        %1196 = vst.msk [vmem:[%s194 + $0x14] sm:$0xf] %vm1190, %v1187
        %1197 = vst.msk [vmem:[%s194 + $0x18] sm:$0xf] %vm1190, %v1188
        %1198 = vst.msk [vmem:[%s194 + $0x1c] sm:$0xf] %vm1190, %v1189
        %s1199 = sand.u32 %s98, 1
        %s1200 = scalar_lea.sflag [#allocation3], %s1199
        %s1201 = sand.u32 %s98, 1
        %s1202 = smul.addr %s1201, 32
        %s1203 = scalar_lea.vmem [#allocation2], %s1202
        %s1204 = sand.u32 %s124, 1
        %s1205 = scalar_lea.sflag [#allocation5], %s1204
        %s1206 = sand.u32 %s124, 1
        %s1207 = smul.addr %s1206, 2
        %s1208 = scalar_lea.vmem [#allocation4], %s1207
        // Predicated region
        $region33: #{tpu_custom_call.1} parent=31 // pred_check
          %p1209 = pneg %p108
        $region34: #{tpu_custom_call.1} parent=31 // pred_check_branch
          %1211 = sbr.rel (%p1209) target = $region36
        $region35: #{tpu_custom_call.1} parent=31 // pred_region
          %1213 = vsyncadd %s1200, 0
          %s1214 = smul.addr %s22, 8
          %s1215 = smul.addr %s1214, 4
          %s1216 = scalar_lea.hbm %s3, %s1215
          %s1217 = sshll.u32 %s1203, 4
          %s1218 = int_to_ptr.vmem [resolvable:$true] %s1217
          %s1219 = sshll.u32 %s1216, 4
          %s1220 = int_to_ptr.hbm [resolvable:$true] %s1219
          %1225 = dma.vmem_to_hbm [thread:$0]  %s1218, 512, %s1220, %s1200, 64, 64, 4
        $region36: #{tpu_custom_call.1} parent=31 // pred_fallthru
          _
        // Predicated region
        $region37: #{tpu_custom_call.1} parent=31 // pred_check
          %p1226 = pneg %p134
        $region38: #{tpu_custom_call.1} parent=31 // pred_check_branch
          %1228 = sbr.rel (%p1226) target = $region40
        $region39: #{tpu_custom_call.1} parent=31 // pred_region
          %1230 = vsyncadd %s1205, 0
          %s1231 = smul.addr %s22, 2
          %s1232 = scalar_lea.hbm %s4, %s1231
          %s1234 = sshll.u32 %s1208, 4
          %s1235 = int_to_ptr.vmem [resolvable:$true] %s1234
          %s1236 = sshll.u32 %s1232, 4
          %s1237 = int_to_ptr.hbm [resolvable:$true] %s1236
          %1239 = dma.vmem_to_hbm [thread:$0]  %s1235, 32, %s1237, %s1205
        $region40: #{tpu_custom_call.1} parent=31 // pred_fallthru
          _
      $region32: #{tpu_custom_call.1} parent=5 // pred_fallthru
        _
      %p1240 = scmp.le.s32.totalorder 2, %s17
      // Predicated region
      $region41: #{tpu_custom_call.1} parent=5 // pred_check
        %p1241 = pneg %p1240
      $region42: #{tpu_custom_call.1} parent=5 // pred_check_branch
        %1243 = sbr.rel (%p1241) target = $region44
      $region43: #{tpu_custom_call.1} parent=5 // pred_region
        %s1244 = ssub.s32 %s17, 2
        // Predicated region
        $region45: #{tpu_custom_call.1} parent=43 // pred_check
          %p1245 = pneg %p114
        $region46: #{tpu_custom_call.1} parent=43 // pred_check_branch
          %1247 = sbr.rel (%p1245) target = $region48
        $region47: #{tpu_custom_call.1} parent=43 // pred_region
          %s1248 = sand.u32 %s99, 1
          %s1249 = scalar_lea.sflag [#allocation3], %s1248
          %s1250 = sand.u32 %s99, 1
          %s1251 = smul.addr %s1250, 32
          %s1252 = scalar_lea.vmem [#allocation2], %s1251
          %1254 = dma.done %s1249, 512
        $region48: #{tpu_custom_call.1} parent=43 // pred_fallthru
          _
        // Predicated region
        $region49: #{tpu_custom_call.1} parent=43 // pred_check
          %p1255 = pneg %p140
        $region50: #{tpu_custom_call.1} parent=43 // pred_check_branch
          %1257 = sbr.rel (%p1255) target = $region52
        $region51: #{tpu_custom_call.1} parent=43 // pred_region
          %s1258 = sand.u32 %s125, 1
          %s1259 = scalar_lea.sflag [#allocation5], %s1258
          %s1260 = sand.u32 %s125, 1
          %s1261 = smul.addr %s1260, 2
          %s1262 = scalar_lea.vmem [#allocation4], %s1261
          %1264 = dma.done %s1259, 32
        $region52: #{tpu_custom_call.1} parent=43 // pred_fallthru
          _
      $region44: #{tpu_custom_call.1} parent=5 // pred_fallthru
        _
    $region6: #{tpu_custom_call.1} parent=1 // loop_footer
      %s21 = sadd.s32 1, %s17
    $region7: #{tpu_custom_call.1} parent=1 // loop_footer_branch
      %16 = sbr.rel target = $region3
    $region8: #{tpu_custom_call.1} parent=1 // loop_exit
      _
    %1265 = vsyncpa [#allocation3], 1
    %s1266 = scalar_lea.sflag [#allocation3], 1
    %1267 = vsyncpa %s1266, 1
    %1268 = vsyncpa [#allocation5], 1
    %s1269 = scalar_lea.sflag [#allocation5], 1
    %1270 = vsyncpa %s1269, 1

</llo_original>
